<compile_context>
chip_gen: v6e
topology: v6e:2x2x1
jax: 0.10.0
libtpu: 0.0.40
codegen_flags: <defaults>
</compile_context>

<pallas_src>
import functools

import jax
import jax.numpy as jnp
from jax import lax
from jax.experimental import pallas as pl
from jax.experimental.pallas import tpu as pltpu


def _resdwc_kernel(x_hbm, w_ref, b_ref, o_ref, buf, sem, *, K, P):
    """One (batch, channel-tile, H-tile) step of depthwise conv + bias + residual.

    x_hbm : (N, H+2P, W, Cp)   HBM (memory_space=ANY), H pre-padded with zeros
    w_ref : (K*K, tc)          lane-dense per-channel taps (VMEM)
    b_ref : (1, tc)            lane-dense bias (VMEM)
    o_ref : (1, TH, W, tc)     output block (auto-pipelined VMEM)
    buf   : (2, TH+2P, W, tc)  manual input double buffer (VMEM scratch)
    sem   : (2,)               DMA semaphores
    """
    n = pl.program_id(0)
    c = pl.program_id(1)
    h = pl.program_id(2)
    n_h = pl.num_programs(2)

    TH = o_ref.shape[1]
    W = o_ref.shape[2]
    tc = o_ref.shape[3]
    THP = buf.shape[1]                      # TH + 2*P

    col0 = c * tc
    if tc % 128 == 0:
        col0 = pl.multiple_of(col0, 128)

    def halo_dma(h_idx, slot):
        row0 = h_idx * TH
        if TH % 8 == 0:
            row0 = pl.multiple_of(row0, 8)
        return pltpu.make_async_copy(
            x_hbm.at[n, pl.ds(row0, THP), pl.ds(0, W), pl.ds(col0, tc)],
            buf.at[slot],
            sem.at[slot],
        )

    slot = h % 2

    # First H-tile of this (n, c) group: nothing was prefetched, fetch now.
    @pl.when(h == 0)
    def _():
        halo_dma(h, slot).start()

    # Wait for the current tile (issued above or prefetched by the previous step).
    halo_dma(h, slot).wait()

    # Prefetch the next H-tile into the other slot while we compute.
    # TODO(synk): could also prefetch across the (n, c) group boundary.
    @pl.when(h + 1 < n_h)
    def _():
        halo_dma(h + 1, 1 - slot).start()

    x = buf[slot]                                        # (THP, W, tc)
    # bf16 tap multiplies stay bf16 on v6e/v7x (f32 accumulate); else all f32.
    mul_dtype = jnp.bfloat16 if x.dtype == jnp.bfloat16 else jnp.float32
    xs = x.astype(mul_dtype)
    ws = w_ref[...].astype(mul_dtype)                    # (K*K, tc)
    b = b_ref[...].astype(jnp.float32)                   # (1, tc)

    # Zero-pad along W once into a single buffer; every tap is then a static
    # slice of it (no K shifted-plane concat/copy passes).
    if P > 0:
        zcol = jnp.zeros((THP, P, tc), mul_dtype)
        xw = jnp.concatenate([zcol, xs, zcol], axis=1)   # (THP, W + 2P, tc)
    else:
        xw = xs

    # Seed accumulator 0 with residual + bias; accumulator 1 gives the VLIW
    # scheduler a second dependence chain.
    acc0 = xs[P:P + TH, :, :].astype(jnp.float32) + b    # (TH, W, tc)
    acc1 = jnp.zeros_like(acc0)

    t = 0
    for ky in range(K):
        for kx in range(K):
            tap = ws[ky * K + kx]                        # (tc,) per-lane taps
            prod = (xw[ky:ky + TH, kx:kx + W, :] * tap).astype(jnp.float32)
            if t % 2 == 0:
                acc0 = acc0 + prod
            else:
                acc1 = acc1 + prod
            t += 1

    o_ref[0] = (acc0 + acc1).astype(o_ref.dtype)


def _pick_block_h(H, est_fn, budget_bytes):
    divisors = [d for d in range(1, H + 1) if H % d == 0]
    fitting = [d for d in divisors if est_fn(d) <= budget_bytes]
    return max(fitting) if fitting else min(divisors)


def resdwc_forward_nhwc(x_nhwc, weight, bias, *, block_h=None):
    """Depthwise conv (groups=C) + bias + residual; x_nhwc: (N, H, W, C)."""
    N, H, W, C = x_nhwc.shape
    K = weight.shape[-1]
    P = K // 2

    # Lane-dense channel tiling: pad C (and weight/bias) to a multiple of 128.
    # TODO(synk): for genuinely tiny C a W-on-lanes layout would waste less HBM
    # traffic than channel padding; kept channels-on-lanes here for generality.
    Cp = ((C + 127) // 128) * 128
    tc = 256 if Cp % 256 == 0 else 128

    w2 = weight.reshape(C, K * K).T                      # (K*K, C) lane-dense
    b2 = bias.reshape(1, C)
    if Cp != C:
        w2 = jnp.pad(w2, ((0, 0), (0, Cp - C)))
        b2 = jnp.pad(b2, ((0, 0), (0, Cp - C)))

    # Pre-pad H by P zero rows (fused with the channel pad) so the in-kernel
    # halo DMA needs no edge cases.
    pad = ((0, 0), (P, P), (0, 0), (0, Cp - C))
    xin = jnp.pad(x_nhwc, pad) if any(p != (0, 0) for p in pad) else x_nhwc

    itemsize = jnp.dtype(x_nhwc.dtype).itemsize

    def vmem_estimate(th):
        thp = th + 2 * P
        out_db = 2 * th * W * tc * itemsize              # double-buffered output block
        in_scr = 2 * thp * W * tc * itemsize             # manual input double buffer
        xw_tmp = thp * (W + 2 * P) * tc * 4              # W-padded plane (f32 worst case)
        accs = 2 * th * W * tc * 4                       # two partial accumulators
        small = 4 * (K * K * tc + tc) * 4                # weights + bias blocks
        return int(1.25 * (out_db + in_scr + xw_tmp + accs + small)) + (1 << 20)

    budget = 40 * 2**20                                  # headroom under v7x's 64 MiB
    if block_h is None:
        TH = _pick_block_h(H, vmem_estimate, budget)
    else:
        if H % block_h != 0:
            raise ValueError(f"block_h={block_h} must divide H={H}")
        TH = block_h
    THP = TH + 2 * P

    # v7x-safe cap, derived from the actual buffer list (not a fixed heuristic).
    vmem_limit = int(min(48 * 2**20, max(16 * 2**20, vmem_estimate(TH) + 8 * 2**20)))

    grid = (N, Cp // tc, H // TH)
    kernel = functools.partial(_resdwc_kernel, K=K, P=P)

    y = pl.pallas_call(
        kernel,
        out_shape=jax.ShapeDtypeStruct((N, H, W, Cp), x_nhwc.dtype),
        grid_spec=pltpu.PrefetchScalarGridSpec(
            num_scalar_prefetch=0,
            grid=grid,
            in_specs=[
                pl.BlockSpec(memory_space=pl.ANY),                  # x stays in HBM
                pl.BlockSpec((K * K, tc), lambda n, c, h: (0, c)),  # taps
                pl.BlockSpec((1, tc), lambda n, c, h: (0, c)),      # bias
            ],
            out_specs=pl.BlockSpec((1, TH, W, tc), lambda n, c, h: (n, h, 0, c)),
            scratch_shapes=[
                pltpu.VMEM((2, THP, W, tc), x_nhwc.dtype),
                pltpu.SemaphoreType.DMA((2,)),
            ],
        ),
        compiler_params=pltpu.CompilerParams(
            # N / channel tiles are independent (megacore-parallel); the H axis
            # carries the manual double-buffer state so it stays arbitrary.
            dimension_semantics=("parallel", "parallel", "arbitrary"),
            vmem_limit_bytes=vmem_limit,
        ),
    )(xin, w2, b2)

    return y[..., :C] if Cp != C else y


def resdwc_forward(x, weight, bias, *, block_h=None):
    """PyTorch-parity entry point: x NCHW, weight (C,1,K,K), bias (C,).

    The transposes below exist only for NCHW parity with the PyTorch module;
    an NHWC end-to-end model should call resdwc_forward_nhwc directly so no
    extra HBM layout passes are issued.
    """
    x_nhwc = jnp.transpose(x, (0, 2, 3, 1))
    y_nhwc = resdwc_forward_nhwc(x_nhwc, weight, bias, block_h=block_h)
    return jnp.transpose(y_nhwc, (0, 3, 1, 2))


def resdwc_reference(x, weight, bias):
    """Pure-JAX reference: depthwise conv (groups=C) + bias + residual, NCHW."""
    C = x.shape[1]
    y = lax.conv_general_dilated(
        x, weight,
        window_strides=(1, 1),
        padding="SAME",
        dimension_numbers=("NCHW", "OIHW", "NCHW"),
        feature_group_count=C,
    )
    return x + y + bias[None, :, None, None]


if __name__ == "__main__":
    key = jax.random.PRNGKey(0)
    k_x, k_w, k_b = jax.random.split(key, 3)

    N, C, H, W, K = 2, 4, 16, 16, 3

    x = jax.random.normal(k_x, (N, C, H, W), dtype=jnp.float32)
    # Conv2d(dim, dim, 3, padding=1, groups=dim) parameter shapes.
    weight = 0.1 * jax.random.normal(k_w, (C, 1, K, K), dtype=jnp.float32)
    bias = 0.1 * jax.random.normal(k_b, (C,), dtype=jnp.float32)

    ref = resdwc_reference(x, weight, bias)

    # Multi-H-tile path: exercises the halo DMA + manual double buffering.
    out_tiled = jax.block_until_ready(resdwc_forward(x, weight, bias, block_h=8))
    assert jnp.allclose(out_tiled, ref, atol=1e-5, rtol=1e-5), "mismatch (block_h=8)"

    # Auto-sized path (single H tile at this small shape).
    out_auto = jax.block_until_ready(resdwc_forward(x, weight, bias))
    assert jnp.allclose(out_auto, ref, atol=1e-5, rtol=1e-5), "mismatch (auto block_h)"

    print("KERNEL_OK")
</pallas_src>

<mosaic_0001>
module attributes {stable_mosaic.version = 11 : i64} {
  func.func @_resdwc_kernel(%arg0: i32, %arg1: i32, %arg2: i32, %arg3: memref<2x18x16x128xf32, #tpu.memory_space<any>>, %arg4: memref<9x128xf32, #tpu.memory_space<vmem>>, %arg5: memref<1x128xf32, #tpu.memory_space<vmem>>, %arg6: memref<1x8x16x128xf32, #tpu.memory_space<vmem>>, %arg7: memref<2x10x16x128xf32, #tpu.memory_space<vmem>>, %arg8: memref<2x!tpu.dma_semaphore, #tpu.memory_space<semaphore_mem>>) attributes {dimension_semantics = [#tpu.dimension_semantics<parallel>, #tpu.dimension_semantics<parallel>, #tpu.dimension_semantics<arbitrary>], iteration_bounds = array<i64: 2, 1, 2>, scalar_prefetch = 0 : i64, scratch_operands = 2 : i64, tpu.core_type = #tpu.core_type<tc>, window_params = [{}, {transform_indices = @transform_1, window_bounds = array<i64: 9, 128>}, {transform_indices = @transform_2, window_bounds = array<i64: 1, 128>}, {transform_indices = @transform_3, window_bounds = array<i64: 1, 8, 16, 128>}]} {
    %c128_i32 = arith.constant 128 : i32
    %0 = arith.muli %arg1, %c128_i32 : i32
    %1 = tpu.assume_multiple %0, 128 : i32
    %c2_i32 = arith.constant 2 : i32
    %c0_i32 = arith.constant 0 : i32
    %2 = arith.cmpi eq, %c2_i32, %c0_i32 : i32
    %c1_i32 = arith.constant 1 : i32
    %3 = arith.select %2, %c1_i32, %c2_i32 : i32
    %4 = arith.remsi %arg2, %3 : i32
    %c0_i32_0 = arith.constant 0 : i32
    %5 = arith.cmpi ne, %4, %c0_i32_0 : i32
    %c0_i32_1 = arith.constant 0 : i32
    %6 = arith.cmpi slt, %4, %c0_i32_1 : i32
    %c0_i32_2 = arith.constant 0 : i32
    %7 = arith.cmpi slt, %3, %c0_i32_2 : i32
    %8 = arith.xori %6, %7 : i1
    %9 = arith.andi %8, %5 : i1
    %10 = arith.addi %4, %3 : i32
    %11 = arith.select %9, %10, %4 : i32
    %c0_i32_3 = arith.constant 0 : i32
    %12 = arith.cmpi eq, %arg2, %c0_i32_3 : i32
    %13 = arith.extui %12 : i1 to i32
    %c0_i32_4 = arith.constant 0 : i32
    %14 = arith.cmpi ne, %13, %c0_i32_4 : i32
    scf.if %14 {
      %c8_i32_23 = arith.constant 8 : i32
      %106 = arith.muli %arg2, %c8_i32_23 : i32
      %107 = tpu.assume_multiple %106, 8 : i32
      %c0_i32_24 = arith.constant 0 : i32
      %108 = tpu.memref_slice %arg3[%arg0, %107, %c0_i32_24, %1] : memref<2x18x16x128xf32, #tpu.memory_space<any>> -> memref<1x10x16x128xf32, #tpu.memory_space<any>>
      %109 = tpu.memref_squeeze %108 : memref<1x10x16x128xf32, #tpu.memory_space<any>> -> memref<10x16x128xf32, #tpu.memory_space<any>>
      %c0_i32_25 = arith.constant 0 : i32
      %c0_i32_26 = arith.constant 0 : i32
      %c0_i32_27 = arith.constant 0 : i32
      %110 = tpu.memref_slice %arg7[%11, %c0_i32_25, %c0_i32_26, %c0_i32_27] : memref<2x10x16x128xf32, #tpu.memory_space<vmem>> -> memref<1x10x16x128xf32, #tpu.memory_space<vmem>>
      %111 = tpu.memref_squeeze %110 : memref<1x10x16x128xf32, #tpu.memory_space<vmem>> -> memref<10x16x128xf32, #tpu.memory_space<vmem>>
      %112 = tpu.memref_slice %arg8[%11] : memref<2x!tpu.dma_semaphore, #tpu.memory_space<semaphore_mem>> -> memref<1x!tpu.dma_semaphore, #tpu.memory_space<semaphore_mem>>
      %113 = tpu.memref_squeeze %112 : memref<1x!tpu.dma_semaphore, #tpu.memory_space<semaphore_mem>> -> memref<!tpu.dma_semaphore, #tpu.memory_space<semaphore_mem>>
      tpu.enqueue_dma source(%109 : memref<10x16x128xf32, #tpu.memory_space<any>>) target(%111 : memref<10x16x128xf32, #tpu.memory_space<vmem>>) target_semaphore(%113 : memref<!tpu.dma_semaphore, #tpu.memory_space<semaphore_mem>>)
    } else {
    }
    %c8_i32 = arith.constant 8 : i32
    %15 = arith.muli %arg2, %c8_i32 : i32
    %16 = tpu.assume_multiple %15, 8 : i32
    %c0_i32_5 = arith.constant 0 : i32
    %17 = tpu.memref_slice %arg3[%arg0, %16, %c0_i32_5, %1] : memref<2x18x16x128xf32, #tpu.memory_space<any>> -> memref<1x10x16x128xf32, #tpu.memory_space<any>>
    %18 = tpu.memref_squeeze %17 : memref<1x10x16x128xf32, #tpu.memory_space<any>> -> memref<10x16x128xf32, #tpu.memory_space<any>>
    %c0_i32_6 = arith.constant 0 : i32
    %c0_i32_7 = arith.constant 0 : i32
    %c0_i32_8 = arith.constant 0 : i32
    %19 = tpu.memref_slice %arg7[%11, %c0_i32_6, %c0_i32_7, %c0_i32_8] : memref<2x10x16x128xf32, #tpu.memory_space<vmem>> -> memref<1x10x16x128xf32, #tpu.memory_space<vmem>>
    %20 = tpu.memref_squeeze %19 : memref<1x10x16x128xf32, #tpu.memory_space<vmem>> -> memref<10x16x128xf32, #tpu.memory_space<vmem>>
    %21 = tpu.memref_slice %arg8[%11] : memref<2x!tpu.dma_semaphore, #tpu.memory_space<semaphore_mem>> -> memref<1x!tpu.dma_semaphore, #tpu.memory_space<semaphore_mem>>
    %22 = tpu.memref_squeeze %21 : memref<1x!tpu.dma_semaphore, #tpu.memory_space<semaphore_mem>> -> memref<!tpu.dma_semaphore, #tpu.memory_space<semaphore_mem>>
    tpu.wait_dma2 semaphore(%22 : memref<!tpu.dma_semaphore, #tpu.memory_space<semaphore_mem>>) src(%18 : memref<10x16x128xf32, #tpu.memory_space<any>>) dst(%20 : memref<10x16x128xf32, #tpu.memory_space<vmem>>)
    %c1_i32_9 = arith.constant 1 : i32
    %23 = arith.addi %arg2, %c1_i32_9 : i32
    %c2_i32_10 = arith.constant 2 : i32
    %24 = arith.cmpi slt, %23, %c2_i32_10 : i32
    %25 = arith.extui %24 : i1 to i32
    %c0_i32_11 = arith.constant 0 : i32
    %26 = arith.cmpi ne, %25, %c0_i32_11 : i32
    scf.if %26 {
      %c1_i32_23 = arith.constant 1 : i32
      %106 = arith.addi %arg2, %c1_i32_23 : i32
      %c1_i32_24 = arith.constant 1 : i32
      %107 = arith.subi %c1_i32_24, %11 : i32
      %c8_i32_25 = arith.constant 8 : i32
      %108 = arith.muli %106, %c8_i32_25 : i32
      %109 = tpu.assume_multiple %108, 8 : i32
      %c0_i32_26 = arith.constant 0 : i32
      %110 = tpu.memref_slice %arg3[%arg0, %109, %c0_i32_26, %1] : memref<2x18x16x128xf32, #tpu.memory_space<any>> -> memref<1x10x16x128xf32, #tpu.memory_space<any>>
      %111 = tpu.memref_squeeze %110 : memref<1x10x16x128xf32, #tpu.memory_space<any>> -> memref<10x16x128xf32, #tpu.memory_space<any>>
      %c0_i32_27 = arith.constant 0 : i32
      %c0_i32_28 = arith.constant 0 : i32
      %c0_i32_29 = arith.constant 0 : i32
      %112 = tpu.memref_slice %arg7[%107, %c0_i32_27, %c0_i32_28, %c0_i32_29] : memref<2x10x16x128xf32, #tpu.memory_space<vmem>> -> memref<1x10x16x128xf32, #tpu.memory_space<vmem>>
      %113 = tpu.memref_squeeze %112 : memref<1x10x16x128xf32, #tpu.memory_space<vmem>> -> memref<10x16x128xf32, #tpu.memory_space<vmem>>
      %114 = tpu.memref_slice %arg8[%107] : memref<2x!tpu.dma_semaphore, #tpu.memory_space<semaphore_mem>> -> memref<1x!tpu.dma_semaphore, #tpu.memory_space<semaphore_mem>>
      %115 = tpu.memref_squeeze %114 : memref<1x!tpu.dma_semaphore, #tpu.memory_space<semaphore_mem>> -> memref<!tpu.dma_semaphore, #tpu.memory_space<semaphore_mem>>
      tpu.enqueue_dma source(%111 : memref<10x16x128xf32, #tpu.memory_space<any>>) target(%113 : memref<10x16x128xf32, #tpu.memory_space<vmem>>) target_semaphore(%115 : memref<!tpu.dma_semaphore, #tpu.memory_space<semaphore_mem>>)
    } else {
    }
    %27 = arith.index_cast %11 : i32 to index
    %c0 = arith.constant 0 : index
    %c0_12 = arith.constant 0 : index
    %c0_13 = arith.constant 0 : index
    %28 = vector.load %arg7[%27, %c0, %c0_12, %c0_13] : memref<2x10x16x128xf32, #tpu.memory_space<vmem>>, vector<1x10x16x128xf32>
    %29 = vector.shape_cast %28 : vector<1x10x16x128xf32> to vector<10x16x128xf32>
    %c0_14 = arith.constant 0 : index
    %c0_15 = arith.constant 0 : index
    %30 = vector.load %arg4[%c0_14, %c0_15] : memref<9x128xf32, #tpu.memory_space<vmem>>, vector<9x128xf32>
    %c0_16 = arith.constant 0 : index
    %c0_17 = arith.constant 0 : index
    %31 = vector.load %arg5[%c0_16, %c0_17] : memref<1x128xf32, #tpu.memory_space<vmem>>, vector<1x128xf32>
    %cst = arith.constant 0.000000e+00 : f32
    %32 = vector.broadcast %cst : f32 to vector<10x1x128xf32>
    %33 = tpu.concatenate %32, %29, %32 in 1 : vector<10x1x128xf32>, vector<10x16x128xf32>, vector<10x1x128xf32> -> vector<10x18x128xf32>
    %34 = vector.extract_strided_slice %29 {offsets = [1, 0, 0], sizes = [8, 16, 128], strides = [1, 1, 1]} : vector<10x16x128xf32> to vector<8x16x128xf32>
    %35 = vector.shape_cast %31 : vector<1x128xf32> to vector<1x1x128xf32>
    %36 = vector.broadcast %35 : vector<1x1x128xf32> to vector<8x16x128xf32>
    %37 = arith.addf %34, %36 : vector<8x16x128xf32>
    %cst_18 = arith.constant 0.000000e+00 : f32
    %38 = vector.broadcast %cst_18 : f32 to vector<8x16x128xf32>
    %39 = vector.extract_strided_slice %30 {offsets = [0, 0], sizes = [1, 128], strides = [1, 1]} : vector<9x128xf32> to vector<1x128xf32>
    %40 = vector.shape_cast %39 : vector<1x128xf32> to vector<128xf32>
    %41 = vector.extract_strided_slice %33 {offsets = [0, 0, 0], sizes = [8, 16, 128], strides = [1, 1, 1]} : vector<10x18x128xf32> to vector<8x16x128xf32>
    %42 = vector.shape_cast %40 : vector<128xf32> to vector<1x1x128xf32>
    %43 = vector.broadcast %42 : vector<1x1x128xf32> to vector<8x16x128xf32>
    %44 = arith.mulf %41, %43 : vector<8x16x128xf32>
    %45 = arith.addf %37, %44 : vector<8x16x128xf32>
    %46 = vector.extract_strided_slice %30 {offsets = [1, 0], sizes = [1, 128], strides = [1, 1]} : vector<9x128xf32> to vector<1x128xf32>
    %47 = vector.shape_cast %46 : vector<1x128xf32> to vector<128xf32>
    %48 = vector.extract_strided_slice %33 {offsets = [0, 1, 0], sizes = [8, 16, 128], strides = [1, 1, 1]} : vector<10x18x128xf32> to vector<8x16x128xf32>
    %49 = vector.shape_cast %47 : vector<128xf32> to vector<1x1x128xf32>
    %50 = vector.broadcast %49 : vector<1x1x128xf32> to vector<8x16x128xf32>
    %51 = arith.mulf %48, %50 : vector<8x16x128xf32>
    %52 = arith.addf %38, %51 : vector<8x16x128xf32>
    %53 = vector.extract_strided_slice %30 {offsets = [2, 0], sizes = [1, 128], strides = [1, 1]} : vector<9x128xf32> to vector<1x128xf32>
    %54 = vector.shape_cast %53 : vector<1x128xf32> to vector<128xf32>
    %55 = vector.extract_strided_slice %33 {offsets = [0, 2, 0], sizes = [8, 16, 128], strides = [1, 1, 1]} : vector<10x18x128xf32> to vector<8x16x128xf32>
    %56 = vector.shape_cast %54 : vector<128xf32> to vector<1x1x128xf32>
    %57 = vector.broadcast %56 : vector<1x1x128xf32> to vector<8x16x128xf32>
    %58 = arith.mulf %55, %57 : vector<8x16x128xf32>
    %59 = arith.addf %45, %58 : vector<8x16x128xf32>
    %60 = vector.extract_strided_slice %30 {offsets = [3, 0], sizes = [1, 128], strides = [1, 1]} : vector<9x128xf32> to vector<1x128xf32>
    %61 = vector.shape_cast %60 : vector<1x128xf32> to vector<128xf32>
    %62 = vector.extract_strided_slice %33 {offsets = [1, 0, 0], sizes = [8, 16, 128], strides = [1, 1, 1]} : vector<10x18x128xf32> to vector<8x16x128xf32>
    %63 = vector.shape_cast %61 : vector<128xf32> to vector<1x1x128xf32>
    %64 = vector.broadcast %63 : vector<1x1x128xf32> to vector<8x16x128xf32>
    %65 = arith.mulf %62, %64 : vector<8x16x128xf32>
    %66 = arith.addf %52, %65 : vector<8x16x128xf32>
    %67 = vector.extract_strided_slice %30 {offsets = [4, 0], sizes = [1, 128], strides = [1, 1]} : vector<9x128xf32> to vector<1x128xf32>
    %68 = vector.shape_cast %67 : vector<1x128xf32> to vector<128xf32>
    %69 = vector.extract_strided_slice %33 {offsets = [1, 1, 0], sizes = [8, 16, 128], strides = [1, 1, 1]} : vector<10x18x128xf32> to vector<8x16x128xf32>
    %70 = vector.shape_cast %68 : vector<128xf32> to vector<1x1x128xf32>
    %71 = vector.broadcast %70 : vector<1x1x128xf32> to vector<8x16x128xf32>
    %72 = arith.mulf %69, %71 : vector<8x16x128xf32>
    %73 = arith.addf %59, %72 : vector<8x16x128xf32>
    %74 = vector.extract_strided_slice %30 {offsets = [5, 0], sizes = [1, 128], strides = [1, 1]} : vector<9x128xf32> to vector<1x128xf32>
    %75 = vector.shape_cast %74 : vector<1x128xf32> to vector<128xf32>
    %76 = vector.extract_strided_slice %33 {offsets = [1, 2, 0], sizes = [8, 16, 128], strides = [1, 1, 1]} : vector<10x18x128xf32> to vector<8x16x128xf32>
    %77 = vector.shape_cast %75 : vector<128xf32> to vector<1x1x128xf32>
    %78 = vector.broadcast %77 : vector<1x1x128xf32> to vector<8x16x128xf32>
    %79 = arith.mulf %76, %78 : vector<8x16x128xf32>
    %80 = arith.addf %66, %79 : vector<8x16x128xf32>
    %81 = vector.extract_strided_slice %30 {offsets = [6, 0], sizes = [1, 128], strides = [1, 1]} : vector<9x128xf32> to vector<1x128xf32>
    %82 = vector.shape_cast %81 : vector<1x128xf32> to vector<128xf32>
    %83 = vector.extract_strided_slice %33 {offsets = [2, 0, 0], sizes = [8, 16, 128], strides = [1, 1, 1]} : vector<10x18x128xf32> to vector<8x16x128xf32>
    %84 = vector.shape_cast %82 : vector<128xf32> to vector<1x1x128xf32>
    %85 = vector.broadcast %84 : vector<1x1x128xf32> to vector<8x16x128xf32>
    %86 = arith.mulf %83, %85 : vector<8x16x128xf32>
    %87 = arith.addf %73, %86 : vector<8x16x128xf32>
    %88 = vector.extract_strided_slice %30 {offsets = [7, 0], sizes = [1, 128], strides = [1, 1]} : vector<9x128xf32> to vector<1x128xf32>
    %89 = vector.shape_cast %88 : vector<1x128xf32> to vector<128xf32>
    %90 = vector.extract_strided_slice %33 {offsets = [2, 1, 0], sizes = [8, 16, 128], strides = [1, 1, 1]} : vector<10x18x128xf32> to vector<8x16x128xf32>
    %91 = vector.shape_cast %89 : vector<128xf32> to vector<1x1x128xf32>
    %92 = vector.broadcast %91 : vector<1x1x128xf32> to vector<8x16x128xf32>
    %93 = arith.mulf %90, %92 : vector<8x16x128xf32>
    %94 = arith.addf %80, %93 : vector<8x16x128xf32>
    %95 = vector.extract_strided_slice %30 {offsets = [8, 0], sizes = [1, 128], strides = [1, 1]} : vector<9x128xf32> to vector<1x128xf32>
    %96 = vector.shape_cast %95 : vector<1x128xf32> to vector<128xf32>
    %97 = vector.extract_strided_slice %33 {offsets = [2, 2, 0], sizes = [8, 16, 128], strides = [1, 1, 1]} : vector<10x18x128xf32> to vector<8x16x128xf32>
    %98 = vector.shape_cast %96 : vector<128xf32> to vector<1x1x128xf32>
    %99 = vector.broadcast %98 : vector<1x1x128xf32> to vector<8x16x128xf32>
    %100 = arith.mulf %97, %99 : vector<8x16x128xf32>
    %101 = arith.addf %87, %100 : vector<8x16x128xf32>
    %102 = arith.addf %101, %94 : vector<8x16x128xf32>
    %c0_19 = arith.constant 0 : index
    %c0_20 = arith.constant 0 : index
    %c0_21 = arith.constant 0 : index
    %c0_22 = arith.constant 0 : index
    %103 = vector.load %arg6[%c0_19, %c0_20, %c0_21, %c0_22] : memref<1x8x16x128xf32, #tpu.memory_space<vmem>>, vector<1x8x16x128xf32>
    %104 = vector.shape_cast %103 : vector<1x8x16x128xf32> to vector<8x16x128xf32>
    %105 = vector.shape_cast %102 : vector<8x16x128xf32> to vector<1x8x16x128xf32>
    tpu.vector_store %arg6[%c0_19, %c0_20, %c0_21, %c0_22], %105 {strides = array<i32>} : memref<1x8x16x128xf32, #tpu.memory_space<vmem>>, vector<1x8x16x128xf32>,
    return
  }
  func.func @transform_1(%arg0: i32, %arg1: i32, %arg2: i32) -> (i32, i32) {
    %c0_i32 = arith.constant 0 : i32
    %c0_i32_0 = arith.constant 0 : i32
    return %c0_i32, %arg1 : i32, i32
  }
  func.func @transform_2(%arg0: i32, %arg1: i32, %arg2: i32) -> (i32, i32) {
    %c0_i32 = arith.constant 0 : i32
    %c0_i32_0 = arith.constant 0 : i32
    return %c0_i32, %arg1 : i32, i32
  }
  func.func @transform_3(%arg0: i32, %arg1: i32, %arg2: i32) -> (i32, i32, i32, i32) {
    %c0_i32 = arith.constant 0 : i32
    %c0_i32_0 = arith.constant 0 : i32
    return %arg0, %arg2, %c0_i32, %arg1 : i32, i32, i32, i32
  }
}

</mosaic_0001>

<llo_original>
// kernel: tpu_custom_call.1
$region0: #{tpu_custom_call.1}
  #allocation0 [shape = 'u32[]', space=smem, size = 0x4, offset = 0x4, fixed_abs, tag = 'smem constant byte address 0x4 - core index']
  #allocation1 [shape = 'u32[144,128]{1,0:T(1,128)}', space=vmem, size = 0x12000, scoped, tag = 'internal scratch']
  #allocation2 [shape = 'f32[2,10,16,128]{3,2,1,0:T(8,128)}', space=vmem, size = 0x28000, scoped, tag = 'scratch operand']
  #allocation3 [shape = 's32[2]{0}', space=sflag, size = 0x8, scoped, tag = 'scratch operand']
  #allocation8 [shape = 's32[]', space=sflag, size = 0x4, offset = 0, fixed_abs, tag = 'sflag constant byte address 0x0 - dummy sync flag']
  #allocation9 [shape = 's32[]', space=sflag, size = 0x4, offset = 0, fixed_abs, tag = 'sflag constant byte address 0x0 - dummy sync flag']
  #allocation10 [shape = 'u32[]', space=smem, size = 0x4, offset = 0x44, fixed_abs, tag = 'smem constant byte address 0x44 - assertion arg 0']
  #allocation11 [shape = 'u32[]', space=smem, size = 0x4, offset = 0x48, fixed_abs, tag = 'smem constant byte address 0x48 - assertion arg 1']
  #allocation12 [shape = 's32[]', space=sflag, size = 0x4, offset = 0, fixed_abs, tag = 'sflag constant byte address 0x0 - dummy sync flag']
  #allocation13 [shape = 's32[]', space=sflag, size = 0x4, offset = 0, fixed_abs, tag = 'sflag constant byte address 0x0 - dummy sync flag']
  %s0 = inlined_call_operand.hbm [shape: f32[2,18,16,128], index: 0, kind: input, shape index: {}]
  %s1 = inlined_call_operand.hbm [shape: f32[9,128], index: 1, kind: input, shape index: {}]
  %s2 = inlined_call_operand.vmem [shape: f32[1,128], index: 2, kind: input, shape index: {}]
  %s3 = inlined_call_operand.hbm [shape: f32[2,16,16,128], index: 3, kind: output, shape index: {}]
  %s4 = sld [smem:[#allocation0]]
  $region61: #{tpu_custom_call.1} parent=0
    _
  %s6 = ssub.s32 1, %s4
  %s7 = scalar_select 0, %s6, %s4
  $region1: #{tpu_custom_call.1} parent=0
    #allocation4 [shape = 'u8[8192]{0}', space=vmem, size = 0x2000, scoped, tag = 'input window, operand 1, single buffered']
    #allocation5 [shape = 's32[2]{0}', space=sflag, size = 0x8, scoped, tag = 'scoped memory for tpu_custom_call.1']
    #allocation6 [shape = 's32[2]{0}', space=sflag, size = 0x8, scoped, tag = 'scoped memory for tpu_custom_call.1']
    #allocation7 [shape = 'u8[131072]{0}', space=vmem, size = 0x20000, scoped, tag = 'output window, operand 0']
    %8 = vsyncpa [#allocation5], 0
    %9 = vsyncpa [#allocation6], 0
    %s10 = scalar_lea.sflag [#allocation6], 1
    %11 = vsyncpa %s10, 0
    loop: start=0, step=1, limit=6
    $region2: #{tpu_custom_call.1} parent=1 // loop_pre_header
      _
    $region3: #{tpu_custom_call.1} parent=1 // loop_header
      %s13 = sphi 0, %s17
      %p14 = scmp.ge.s32.totalorder %s13, 6
      %s20 = sphi 0, %s39
      %s21 = sphi 0, %s35
      %s22 = sphi 0, %s31
      %s23 = sphi 0, %s20
      %s24 = sphi 0, %s21
      %s25 = sphi 0, %s22
      %s26 = sphi 0, %s23
      %s27 = sphi 0, %s24
      %s28 = sphi 0, %s25
      %s42 = sphi 0, %s44
      %s45 = sphi 0, %s42
      %s46 = sphi 0, %s45
      %s62 = sphi 0, %s46
      %s68 = sphi 0, %s70
      %s71 = sphi 0, %s68
      %s72 = sphi 0, %s71
      %s88 = sphi 0, %s72
      %s98 = sphi 0, %s100
      %s101 = sphi 0, %s98
      %s102 = sphi 0, %s101
      %s118 = sphi 0, %s102
    $region4: #{tpu_custom_call.1} parent=1 // loop_header_branch
      %16 = sbr.rel (%p14) target = $region8
    $region5: #{tpu_custom_call.1} parent=1 // loop_body
      %s18 = ssub.s32 %s13, 1
      %s19 = ssub.s32 %s13, 2
      %s29 = sadd.s32 1, %s22
      %p30 = scmp.ge.s32.totalorder %s29, 2
      %s31 = scalar_select %p30, 0, %s29
      %s32 = sadd.s32 1, %s21
      %s33 = scalar_select %p30, %s32, %s21
      %p34 = scmp.ge.s32.totalorder %s33, 1
      %s35 = scalar_select %p34, 0, %s33
      %s36 = sadd.s32 1, %s20
      %s37 = scalar_select %p34, %s36, %s20
      %p38 = scmp.ge.s32.totalorder %s37, 2
      %s39 = scalar_select %p38, 0, %s37
      %s40 = ssub.s32 %s21, %s35
      %p41 = scmp.eq.s32.totalorder %s40, 0
      %s43 = sadd.s32 %s42, 1
      %s44 = scalar_select %p41, %s42, %s43
      %p47 = pneg %p41
      %p48 = scmp.eq.s32.totalorder %s13, 3
      %p49 = por %p47, %p48
      %p50 = scmp.ne.s32.totalorder %s42, %s45
      %p51 = scmp.eq.s32.totalorder %s13, 0
      %p52 = por %p50, %p51
      %p53 = scmp.ne.s32.totalorder %s42, %s45
      %p54 = scmp.eq.s32.totalorder %s18, 3
      %p55 = por %p53, %p54
      %p56 = scmp.ne.s32.totalorder %s45, %s46
      %p57 = scmp.eq.s32.totalorder %s18, 0
      %p58 = por %p56, %p57
      %p59 = scmp.ne.s32.totalorder %s45, %s46
      %p60 = scmp.eq.s32.totalorder %s19, 3
      %p61 = por %p59, %p60
      %p63 = scmp.ne.s32.totalorder %s46, %s62
      %p64 = scmp.eq.s32.totalorder %s19, 0
      %p65 = por %p63, %p64
      %s66 = ssub.s32 %s21, %s35
      %p67 = scmp.eq.s32.totalorder %s66, 0
      %s69 = sadd.s32 %s68, 1
      %s70 = scalar_select %p67, %s68, %s69
      %p73 = pneg %p67
      %p74 = scmp.eq.s32.totalorder %s13, 3
      %p75 = por %p73, %p74
      %p76 = scmp.ne.s32.totalorder %s68, %s71
      %p77 = scmp.eq.s32.totalorder %s13, 0
      %p78 = por %p76, %p77
      %p79 = scmp.ne.s32.totalorder %s68, %s71
      %p80 = scmp.eq.s32.totalorder %s18, 3
      %p81 = por %p79, %p80
      %p82 = scmp.ne.s32.totalorder %s71, %s72
      %p83 = scmp.eq.s32.totalorder %s18, 0
      %p84 = por %p82, %p83
      %p85 = scmp.ne.s32.totalorder %s71, %s72
      %p86 = scmp.eq.s32.totalorder %s19, 3
      %p87 = por %p85, %p86
      %p89 = scmp.ne.s32.totalorder %s72, %s88
      %p90 = scmp.eq.s32.totalorder %s19, 0
      %p91 = por %p89, %p90
      %s92 = ssub.s32 %s20, %s39
      %s93 = ssub.s32 %s22, %s31
      %s94 = sor.u32 %s92, %s93
      %s95 = ssub.s32 %s21, %s35
      %s96 = sor.u32 %s94, %s95
      %p97 = scmp.eq.s32.totalorder %s96, 0
      %s99 = sadd.s32 %s98, 1
      %s100 = scalar_select %p97, %s98, %s99
      %p103 = pneg %p97
      %p104 = scmp.eq.s32.totalorder %s13, 3
      %p105 = por %p103, %p104
      %p106 = scmp.ne.s32.totalorder %s98, %s101
      %p107 = scmp.eq.s32.totalorder %s13, 0
      %p108 = por %p106, %p107
      %p109 = scmp.ne.s32.totalorder %s98, %s101
      %p110 = scmp.eq.s32.totalorder %s18, 3
      %p111 = por %p109, %p110
      %p112 = scmp.ne.s32.totalorder %s101, %s102
      %p113 = scmp.eq.s32.totalorder %s18, 0
      %p114 = por %p112, %p113
      %p115 = scmp.ne.s32.totalorder %s101, %s102
      %p116 = scmp.eq.s32.totalorder %s19, 3
      %p117 = por %p115, %p116
      %p119 = scmp.ne.s32.totalorder %s102, %s118
      %p120 = scmp.eq.s32.totalorder %s19, 0
      %p121 = por %p119, %p120
      %p122 = scmp.le.s32.totalorder 1, %s13
      %p123 = scmp.lt.s32.totalorder %s13, 5
      %p124 = pnand %p122, %p123
      %p125 = pneg %p124
      // Predicated region
      $region9: #{tpu_custom_call.1} parent=5 // pred_check
        _
      $region10: #{tpu_custom_call.1} parent=5 // pred_check_branch
        %127 = sbr.rel (%p124) target = $region12
      $region11: #{tpu_custom_call.1} parent=5 // pred_region
        %s128 = ssub.s32 %s13, 1
        // Predicated region
        $region13: #{tpu_custom_call.1} parent=11 // pred_check
          %p129 = pneg %p58
        $region14: #{tpu_custom_call.1} parent=11 // pred_check_branch
          %131 = sbr.rel (%p129) target = $region16
        $region15: #{tpu_custom_call.1} parent=11 // pred_region
          %s133 = ssub.s32 256, 256
          %134 = vsyncadd [#allocation5], %s133
          %s135 = smul.addr %s24, 128
          %s136 = scalar_lea.hbm %s1, %s135
          %s137 = sshll.u32 [#allocation4], 4
          %s138 = int_to_ptr.vmem [resolvable:$true] %s137
          %143 = dma.hbm_to_vmem [thread:$0]  %s136, 256, %s138, [#allocation5], 128, 128, 8
        $region16: #{tpu_custom_call.1} parent=11 // pred_fallthru
          _
        // Predicated region
        $region17: #{tpu_custom_call.1} parent=11 // pred_check
          %p144 = pneg %p84
        $region18: #{tpu_custom_call.1} parent=11 // pred_check_branch
          %146 = sbr.rel (%p144) target = $region20
        $region19: #{tpu_custom_call.1} parent=11 // pred_region
          %p147 = scmp.lt.s32.totalorder %s24, 0
          %s148 = scalar_select %p147, %s24, 0
          %s149 = scalar_lea.vmem %s2, %s148
        $region20: #{tpu_custom_call.1} parent=11 // pred_fallthru
          _
      $region12: #{tpu_custom_call.1} parent=5 // pred_fallthru
        _
      %p150 = scmp.lt.s32.totalorder %s13, 4
      // Predicated region
      $region21: #{tpu_custom_call.1} parent=5 // pred_check
        %p151 = pneg %p150
      $region22: #{tpu_custom_call.1} parent=5 // pred_check_branch
        %153 = sbr.rel (%p151) target = $region24
      $region23: #{tpu_custom_call.1} parent=5 // pred_region
        _
      $region24: #{tpu_custom_call.1} parent=5 // pred_fallthru
        _
      %p154 = scmp.le.s32.totalorder 1, %s13
      %p155 = scmp.lt.s32.totalorder %s13, 5
      %p156 = pnand %p154, %p155
      %p157 = pneg %p156
      // Predicated region
      $region25: #{tpu_custom_call.1} parent=5 // pred_check
        _
      $region26: #{tpu_custom_call.1} parent=5 // pred_check_branch
        %159 = sbr.rel (%p156) target = $region28
      $region27: #{tpu_custom_call.1} parent=5 // pred_region
        %s160 = ssub.s32 %s13, 1
        // Predicated region
        $region29: #{tpu_custom_call.1} parent=27 // pred_check
          %p161 = pneg %p58
        $region30: #{tpu_custom_call.1} parent=27 // pred_check_branch
          %163 = sbr.rel (%p161) target = $region32
        $region31: #{tpu_custom_call.1} parent=27 // pred_region
          %164 = dma.done [#allocation5], 256
        $region32: #{tpu_custom_call.1} parent=27 // pred_fallthru
          _
        %p165 = pneg %p58
        %p166 = pneg %p55
        %p167 = scmp.lt.s32.totalorder %s24, 0
        %s168 = scalar_select %p167, %s24, 0
        %s169 = scalar_lea.vmem %s2, %s168
        %p170 = pneg %p84
        %p171 = pneg %p81
        %p172 = pneg %p114
        %p173 = pneg %p111
        %s174 = sand.u32 %s101, 1
        %s175 = scalar_lea.sflag [#allocation6], %s174
        %s176 = sand.u32 %s101, 1
        %s177 = smul.addr %s176, 128
        %s178 = scalar_lea.vmem [#allocation7], %s177
        %p179 = scmp.lt.s32.totalorder %s24, 0
        %s180 = scalar_select %p179, %s24, 0
        %s181 = scalar_lea.vmem %s2, %s180
        %s182 = smul.u32 8, %s25
        %s183 = smul.u32 %s24, 128
        %p184 = scmp.lt.s32.totalorder %s25, 0
        %s185 = ssub.s32 0, %s25
        %s186 = scalar_select %p184, %s185, %s25
        %s187 = sand.u32 %s186, 1
        %s188 = ssub.s32 0, %s187
        %s189 = scalar_select %p184, %s188, %s187
        %p190 = scmp.ne.s32.totalorder %s189, 0
        %p191 = scmp.lt.s32.totalorder %s189, 0
        %p192 = pnand %p191, %p190
        %p193 = pneg %p192
        %s194 = sadd.s32 %s189, 2
        %s195 = scalar_select %p193, %s194, %s189
        %p196 = scmp.eq.s32.totalorder %s25, 0
        // Predicated region
        $region33: #{tpu_custom_call.1} parent=27 // pred_check
          %p197 = pneg %p196
        $region34: #{tpu_custom_call.1} parent=27 // pred_check_branch
          %199 = sbr.rel (%p197) target = $region36
        $region35: #{tpu_custom_call.1} parent=27 // pred_region
          %s200 = smul.u32 %s25, 8
          %s201 = sshra.s32 %s183, 7
          %s202 = sand.u32 %s183, 127
          %s203 = smul.u32 %s200, 16
          %s204 = sadd.s32 %s201, %s203
          %s205 = smul.u32 %s23, 288
          %s206 = sadd.s32 %s204, %s205
          %s207 = smul.addr %s206, 16
          %s208 = scalar_lea.hbm %s0, %s207
          %s209 = smul.u32 %s195, 160
          %s210 = scalar_lea.vmem [#allocation2], %s209
          %s211 = scalar_lea.sflag [#allocation3], %s195
          // Predicated region
          $region37: #{tpu_custom_call.1} parent=35 // pred_check
            _
          $region38: #{tpu_custom_call.1} parent=35 // pred_check_branch
            %213 = sbr.rel target = $region40
          $region39: #{tpu_custom_call.1} parent=35 // pred_region
            %214 = sst [smem:[#allocation10]] [#allocation9]
            %215 = sst [smem:[#allocation11]] [#allocation8]
          $region40: #{tpu_custom_call.1} parent=35 // pred_fallthru
            _
          %217 = shalt.err (0)
          %s219 = sshll.u32 %s210, 4
          %s220 = int_to_ptr.vmem [resolvable:$true] %s219
          %222 = dma.hbm_to_vmem [thread:$0]  %s208, 2560, %s220, %s211
        $region36: #{tpu_custom_call.1} parent=27 // pred_fallthru
          _
        %s223 = smul.u32 %s25, 8
        %s224 = smul.u32 %s195, 160
        %s225 = scalar_lea.vmem [#allocation2], %s224
        %s226 = scalar_lea.sflag [#allocation3], %s195
        %s227 = smul.u32 10, 16
        %s228 = smul.u32 %s227, 1
        %s229 = sshll.u32 %s228, 4
        %230 = dma.done %s226, %s229
        %s231 = sadd.s32 %s25, 1
        %p232 = scmp.lt.s32.totalorder %s231, 2
        // Predicated region
        $region41: #{tpu_custom_call.1} parent=27 // pred_check
          %p233 = pneg %p232
        $region42: #{tpu_custom_call.1} parent=27 // pred_check_branch
          %235 = sbr.rel (%p233) target = $region44
        $region43: #{tpu_custom_call.1} parent=27 // pred_region
          %s236 = ssub.s32 1, %s195
          %s237 = smul.u32 %s231, 8
          %s238 = sshra.s32 %s183, 7
          %s239 = sand.u32 %s183, 127
          %s240 = smul.u32 %s237, 16
          %s241 = sadd.s32 %s238, %s240
          %s242 = smul.u32 %s23, 288
          %s243 = sadd.s32 %s241, %s242
          %s244 = smul.addr %s243, 16
          %s245 = scalar_lea.hbm %s0, %s244
          %s246 = smul.u32 %s236, 160
          %s247 = scalar_lea.vmem [#allocation2], %s246
          %s248 = scalar_lea.sflag [#allocation3], %s236
          // Predicated region
          $region45: #{tpu_custom_call.1} parent=43 // pred_check
            _
          $region46: #{tpu_custom_call.1} parent=43 // pred_check_branch
            %250 = sbr.rel target = $region48
          $region47: #{tpu_custom_call.1} parent=43 // pred_region
            %251 = sst [smem:[#allocation10]] [#allocation13]
            %252 = sst [smem:[#allocation11]] [#allocation12]
          $region48: #{tpu_custom_call.1} parent=43 // pred_fallthru
            _
          %254 = shalt.err (0)
          %s256 = sshll.u32 %s247, 4
          %s257 = int_to_ptr.vmem [resolvable:$true] %s256
          %259 = dma.hbm_to_vmem [thread:$0]  %s245, 2560, %s257, %s248
        $region44: #{tpu_custom_call.1} parent=27 // pred_fallthru
          _
        %v260 = vld [vmem:[%s225] sm:$0xff]
        %v261 = vld [vmem:[%s225 + $0x8] sm:$0xff]
        %v262 = vld [vmem:[%s225 + $0x10] sm:$0xff]
        %v263 = vld [vmem:[%s225 + $0x18] sm:$0xff]
        %v264 = vld [vmem:[%s225 + $0x20] sm:$0xff]
        %v265 = vld [vmem:[%s225 + $0x28] sm:$0xff]
        %v266 = vld [vmem:[%s225 + $0x30] sm:$0xff]
        %v267 = vld [vmem:[%s225 + $0x38] sm:$0xff]
        %v268 = vld [vmem:[%s225 + $0x40] sm:$0xff]
        %v269 = vld [vmem:[%s225 + $0x48] sm:$0xff]
        %v270 = vld [vmem:[%s225 + $0x50] sm:$0xff]
        %v271 = vld [vmem:[%s225 + $0x58] sm:$0xff]
        %v272 = vld [vmem:[%s225 + $0x60] sm:$0xff]
        %v273 = vld [vmem:[%s225 + $0x68] sm:$0xff]
        %v274 = vld [vmem:[%s225 + $0x70] sm:$0xff]
        %v275 = vld [vmem:[%s225 + $0x78] sm:$0xff]
        %v276 = vld [vmem:[%s225 + $0x80] sm:$0xff]
        %v277 = vld [vmem:[%s225 + $0x88] sm:$0xff]
        %v278 = vld [vmem:[%s225 + $0x90] sm:$0xff]
        %v279 = vld [vmem:[%s225 + $0x98] sm:$0xff]
        %v280 = vld [vmem:[#allocation4] sm:$0xff]
        %v281 = vld [vmem:[#allocation4 + $0x8] sm:$0x1]
        %v282 = vld [vmem:[%s181] sm:$0x1]
        %vm303 = vcmask 1040384
        %v304 = vrot.slane %v260, 7
        %v305 = vrot.slane %v261, 7
        %v306 = vsel %vm303, %v304, %v305
        %v307 = vrot.slane %v262, 7
        %v308 = vrot.slane %v263, 7
        %v309 = vsel %vm303, %v307, %v308
        %v310 = vrot.slane %v264, 7
        %v311 = vrot.slane %v265, 7
        %v312 = vsel %vm303, %v310, %v311
        %v313 = vrot.slane %v266, 7
        %v314 = vrot.slane %v267, 7
        %v315 = vsel %vm303, %v313, %v314
        %v316 = vrot.slane %v268, 7
        %v317 = vrot.slane %v269, 7
        %v318 = vsel %vm303, %v316, %v317
        %v319 = vrot.slane %v270, 7
        %v320 = vrot.slane %v271, 7
        %v321 = vsel %vm303, %v319, %v320
        %v322 = vrot.slane %v272, 7
        %v323 = vrot.slane %v273, 7
        %v324 = vsel %vm303, %v322, %v323
        %v325 = vrot.slane %v274, 7
        %v326 = vrot.slane %v275, 7
        %v327 = vsel %vm303, %v325, %v326
        %v328 = vrot.slane %v276, 7
        %v329 = vrot.slane %v277, 7
        %v330 = vsel %vm303, %v328, %v329
        %v331 = vrot.slane %v278, 7
        %v332 = vrot.slane %v279, 7
        %v333 = vsel %vm303, %v331, %v332
        %v364 = vsel %vm303, 0.0, %v304
        %v365 = vsel %vm303, 0.0, %v307
        %v366 = vsel %vm303, 0.0, %v310
        %v367 = vsel %vm303, 0.0, %v313
        %v368 = vsel %vm303, 0.0, %v316
        %v369 = vsel %vm303, 0.0, %v319
        %v370 = vsel %vm303, 0.0, %v322
        %v371 = vsel %vm303, 0.0, %v325
        %v372 = vsel %vm303, 0.0, %v328
        %v373 = vsel %vm303, 0.0, %v331
        %v374 = vsel %vm303, %v305, 0.0
        %v375 = vsel %vm303, %v308, 0.0
        %v376 = vsel %vm303, %v311, 0.0
        %v377 = vsel %vm303, %v314, 0.0
        %v378 = vsel %vm303, %v317, 0.0
        %v379 = vsel %vm303, %v320, 0.0
        %v380 = vsel %vm303, %v323, 0.0
        %v381 = vsel %vm303, %v326, 0.0
        %v382 = vsel %vm303, %v329, 0.0
        %v383 = vsel %vm303, %v332, 0.0
        %v385 = vlaneseq
        %v386 = vshrl.u32 %v385, 7
        %v387 = vsub.s32 0, %v386
        %v388 = vrot.slane %v282, %v387
        %v390 = vadd.f32 %v262, %v388
        %v391 = vadd.f32 %v263, %v388
        %v392 = vadd.f32 %v264, %v388
        %v393 = vadd.f32 %v265, %v388
        %v394 = vadd.f32 %v266, %v388
        %v395 = vadd.f32 %v267, %v388
        %v396 = vadd.f32 %v268, %v388
        %v397 = vadd.f32 %v269, %v388
        %v398 = vadd.f32 %v270, %v388
        %v399 = vadd.f32 %v271, %v388
        %v400 = vadd.f32 %v272, %v388
        %v401 = vadd.f32 %v273, %v388
        %v402 = vadd.f32 %v274, %v388
        %v403 = vadd.f32 %v275, %v388
        %v404 = vadd.f32 %v276, %v388
        %v405 = vadd.f32 %v277, %v388
        %v406 = vlaneseq
        %v407 = vshrl.u32 %v406, 7
        %v408 = vsub.s32 0, %v407
        %v409 = vrot.slane %v280, %v408
        %v410 = vmul.f32 %v364, %v409
        %v411 = vmul.f32 %v306, %v409
        %v412 = vmul.f32 %v365, %v409
        %v413 = vmul.f32 %v309, %v409
        %v414 = vmul.f32 %v366, %v409
        %v415 = vmul.f32 %v312, %v409
        %v416 = vmul.f32 %v367, %v409
        %v417 = vmul.f32 %v315, %v409
        %v418 = vmul.f32 %v368, %v409
        %v419 = vmul.f32 %v318, %v409
        %v420 = vmul.f32 %v369, %v409
        %v421 = vmul.f32 %v321, %v409
        %v422 = vmul.f32 %v370, %v409
        %v423 = vmul.f32 %v324, %v409
        %v424 = vmul.f32 %v371, %v409
        %v425 = vmul.f32 %v327, %v409
        %v426 = vadd.f32 %v390, %v410
        %v427 = vadd.f32 %v391, %v411
        %v428 = vadd.f32 %v392, %v412
        %v429 = vadd.f32 %v393, %v413
        %v430 = vadd.f32 %v394, %v414
        %v431 = vadd.f32 %v395, %v415
        %v432 = vadd.f32 %v396, %v416
        %v433 = vadd.f32 %v397, %v417
        %v434 = vadd.f32 %v398, %v418
        %v435 = vadd.f32 %v399, %v419
        %v436 = vadd.f32 %v400, %v420
        %v437 = vadd.f32 %v401, %v421
        %v438 = vadd.f32 %v402, %v422
        %v439 = vadd.f32 %v403, %v423
        %v440 = vadd.f32 %v404, %v424
        %v441 = vadd.f32 %v405, %v425
        %v442 = vlaneseq
        %v443 = vshrl.u32 %v442, 7
        %v444 = vsub.s32 1, %v443
        %v445 = vrot.slane %v280, %v444
        %v446 = vmul.f32 %v364, %v445
        %v447 = vmul.f32 %v306, %v445
        %v448 = vmul.f32 %v374, %v445
        %v449 = vmul.f32 %v365, %v445
        %v450 = vmul.f32 %v309, %v445
        %v451 = vmul.f32 %v375, %v445
        %v452 = vmul.f32 %v366, %v445
        %v453 = vmul.f32 %v312, %v445
        %v454 = vmul.f32 %v376, %v445
        %v455 = vmul.f32 %v367, %v445
        %v456 = vmul.f32 %v315, %v445
        %v457 = vmul.f32 %v377, %v445
        %v458 = vmul.f32 %v368, %v445
        %v459 = vmul.f32 %v318, %v445
        %v460 = vmul.f32 %v378, %v445
        %v461 = vmul.f32 %v369, %v445
        %v462 = vmul.f32 %v321, %v445
        %v463 = vmul.f32 %v379, %v445
        %v464 = vmul.f32 %v370, %v445
        %v465 = vmul.f32 %v324, %v445
        %v466 = vmul.f32 %v380, %v445
        %v467 = vmul.f32 %v371, %v445
        %v468 = vmul.f32 %v327, %v445
        %v469 = vmul.f32 %v381, %v445
        %v470 = vadd.f32 %v446, 0.0
        %v471 = vadd.f32 %v447, 0.0
        %v472 = vadd.f32 %v448, 0.0
        %v473 = vadd.f32 %v449, 0.0
        %v474 = vadd.f32 %v450, 0.0
        %v475 = vadd.f32 %v451, 0.0
        %v476 = vadd.f32 %v452, 0.0
        %v477 = vadd.f32 %v453, 0.0
        %v478 = vadd.f32 %v454, 0.0
        %v479 = vadd.f32 %v455, 0.0
        %v480 = vadd.f32 %v456, 0.0
        %v481 = vadd.f32 %v457, 0.0
        %v482 = vadd.f32 %v458, 0.0
        %v483 = vadd.f32 %v459, 0.0
        %v484 = vadd.f32 %v460, 0.0
        %v485 = vadd.f32 %v461, 0.0
        %v486 = vadd.f32 %v462, 0.0
        %v487 = vadd.f32 %v463, 0.0
        %v488 = vadd.f32 %v464, 0.0
        %v489 = vadd.f32 %v465, 0.0
        %v490 = vadd.f32 %v466, 0.0
        %v491 = vadd.f32 %v467, 0.0
        %v492 = vadd.f32 %v468, 0.0
        %v493 = vadd.f32 %v469, 0.0
        %v494 = vlaneseq
        %v495 = vshrl.u32 %v494, 7
        %v496 = vsub.s32 2, %v495
        %v497 = vrot.slane %v280, %v496
        %v498 = vmul.f32 %v364, %v497
        %v499 = vmul.f32 %v306, %v497
        %v500 = vmul.f32 %v374, %v497
        %v501 = vmul.f32 %v365, %v497
        %v502 = vmul.f32 %v309, %v497
        %v503 = vmul.f32 %v375, %v497
        %v504 = vmul.f32 %v366, %v497
        %v505 = vmul.f32 %v312, %v497
        %v506 = vmul.f32 %v376, %v497
        %v507 = vmul.f32 %v367, %v497
        %v508 = vmul.f32 %v315, %v497
        %v509 = vmul.f32 %v377, %v497
        %v510 = vmul.f32 %v368, %v497
        %v511 = vmul.f32 %v318, %v497
        %v512 = vmul.f32 %v378, %v497
        %v513 = vmul.f32 %v369, %v497
        %v514 = vmul.f32 %v321, %v497
        %v515 = vmul.f32 %v379, %v497
        %v516 = vmul.f32 %v370, %v497
        %v517 = vmul.f32 %v324, %v497
        %v518 = vmul.f32 %v380, %v497
        %v519 = vmul.f32 %v371, %v497
        %v520 = vmul.f32 %v327, %v497
        %v521 = vmul.f32 %v381, %v497
        %vm546 = vcmask 1045504
        %v547 = vrot.slane %v498, 2
        %v548 = vrot.slane %v499, 2
        %v549 = vsel %vm546, %v547, %v548
        %v550 = vrot.slane %v500, 2
        %v551 = vsel %vm546, %v548, %v550
        %v552 = vrot.slane %v501, 2
        %v553 = vrot.slane %v502, 2
        %v554 = vsel %vm546, %v552, %v553
        %v555 = vrot.slane %v503, 2
        %v556 = vsel %vm546, %v553, %v555
        %v557 = vrot.slane %v504, 2
        %v558 = vrot.slane %v505, 2
        %v559 = vsel %vm546, %v557, %v558
        %v560 = vrot.slane %v506, 2
        %v561 = vsel %vm546, %v558, %v560
        %v562 = vrot.slane %v507, 2
        %v563 = vrot.slane %v508, 2
        %v564 = vsel %vm546, %v562, %v563
        %v565 = vrot.slane %v509, 2
        %v566 = vsel %vm546, %v563, %v565
        %v567 = vrot.slane %v510, 2
        %v568 = vrot.slane %v511, 2
        %v569 = vsel %vm546, %v567, %v568
        %v570 = vrot.slane %v512, 2
        %v571 = vsel %vm546, %v568, %v570
        %v572 = vrot.slane %v513, 2
        %v573 = vrot.slane %v514, 2
        %v574 = vsel %vm546, %v572, %v573
        %v575 = vrot.slane %v515, 2
        %v576 = vsel %vm546, %v573, %v575
        %v577 = vrot.slane %v516, 2
        %v578 = vrot.slane %v517, 2
        %v579 = vsel %vm546, %v577, %v578
        %v580 = vrot.slane %v518, 2
        %v581 = vsel %vm546, %v578, %v580
        %v582 = vrot.slane %v519, 2
        %v583 = vrot.slane %v520, 2
        %v584 = vsel %vm546, %v582, %v583
        %v585 = vrot.slane %v521, 2
        %v586 = vsel %vm546, %v583, %v585
        %v603 = vadd.f32 %v426, %v549
        %v604 = vadd.f32 %v427, %v551
        %v605 = vadd.f32 %v428, %v554
        %v606 = vadd.f32 %v429, %v556
        %v607 = vadd.f32 %v430, %v559
        %v608 = vadd.f32 %v431, %v561
        %v609 = vadd.f32 %v432, %v564
        %v610 = vadd.f32 %v433, %v566
        %v611 = vadd.f32 %v434, %v569
        %v612 = vadd.f32 %v435, %v571
        %v613 = vadd.f32 %v436, %v574
        %v614 = vadd.f32 %v437, %v576
        %v615 = vadd.f32 %v438, %v579
        %v616 = vadd.f32 %v439, %v581
        %v617 = vadd.f32 %v440, %v584
        %v618 = vadd.f32 %v441, %v586
        %v619 = vlaneseq
        %v620 = vshrl.u32 %v619, 7
        %v621 = vsub.s32 3, %v620
        %v622 = vrot.slane %v280, %v621
        %v623 = vmul.f32 %v365, %v622
        %v624 = vmul.f32 %v309, %v622
        %v625 = vmul.f32 %v366, %v622
        %v626 = vmul.f32 %v312, %v622
        %v627 = vmul.f32 %v367, %v622
        %v628 = vmul.f32 %v315, %v622
        %v629 = vmul.f32 %v368, %v622
        %v630 = vmul.f32 %v318, %v622
        %v631 = vmul.f32 %v369, %v622
        %v632 = vmul.f32 %v321, %v622
        %v633 = vmul.f32 %v370, %v622
        %v634 = vmul.f32 %v324, %v622
        %v635 = vmul.f32 %v371, %v622
        %v636 = vmul.f32 %v327, %v622
        %v637 = vmul.f32 %v372, %v622
        %v638 = vmul.f32 %v330, %v622
        %v655 = vrot.slane %v623, 7
        %v656 = vrot.slane %v624, 7
        %v657 = vsel %vm303, %v655, %v656
        %v658 = vrot.slane %v625, 7
        %v659 = vrot.slane %v626, 7
        %v660 = vsel %vm303, %v658, %v659
        %v661 = vrot.slane %v627, 7
        %v662 = vrot.slane %v628, 7
        %v663 = vsel %vm303, %v661, %v662
        %v664 = vrot.slane %v629, 7
        %v665 = vrot.slane %v630, 7
        %v666 = vsel %vm303, %v664, %v665
        %v667 = vrot.slane %v631, 7
        %v668 = vrot.slane %v632, 7
        %v669 = vsel %vm303, %v667, %v668
        %v670 = vrot.slane %v633, 7
        %v671 = vrot.slane %v634, 7
        %v672 = vsel %vm303, %v670, %v671
        %v673 = vrot.slane %v635, 7
        %v674 = vrot.slane %v636, 7
        %v675 = vsel %vm303, %v673, %v674
        %v676 = vrot.slane %v637, 7
        %v677 = vrot.slane %v638, 7
        %v678 = vsel %vm303, %v676, %v677
        %v703 = vadd.f32 %v470, %v655
        %v704 = vadd.f32 %v471, %v657
        %v705 = vadd.f32 %v472, %v656
        %v706 = vadd.f32 %v473, %v658
        %v707 = vadd.f32 %v474, %v660
        %v708 = vadd.f32 %v475, %v659
        %v709 = vadd.f32 %v476, %v661
        %v710 = vadd.f32 %v477, %v663
        %v711 = vadd.f32 %v478, %v662
        %v712 = vadd.f32 %v479, %v664
        %v713 = vadd.f32 %v480, %v666
        %v714 = vadd.f32 %v481, %v665
        %v715 = vadd.f32 %v482, %v667
        %v716 = vadd.f32 %v483, %v669
        %v717 = vadd.f32 %v484, %v668
        %v718 = vadd.f32 %v485, %v670
        %v719 = vadd.f32 %v486, %v672
        %v720 = vadd.f32 %v487, %v671
        %v721 = vadd.f32 %v488, %v673
        %v722 = vadd.f32 %v489, %v675
        %v723 = vadd.f32 %v490, %v674
        %v724 = vadd.f32 %v491, %v676
        %v725 = vadd.f32 %v492, %v678
        %v726 = vadd.f32 %v493, %v677
        %v727 = vlaneseq
        %v728 = vshrl.u32 %v727, 7
        %v729 = vsub.s32 4, %v728
        %v730 = vrot.slane %v280, %v729
        %v731 = vmul.f32 %v365, %v730
        %v732 = vmul.f32 %v309, %v730
        %v733 = vmul.f32 %v375, %v730
        %v734 = vmul.f32 %v366, %v730
        %v735 = vmul.f32 %v312, %v730
        %v736 = vmul.f32 %v376, %v730
        %v737 = vmul.f32 %v367, %v730
        %v738 = vmul.f32 %v315, %v730
        %v739 = vmul.f32 %v377, %v730
        %v740 = vmul.f32 %v368, %v730
        %v741 = vmul.f32 %v318, %v730
        %v742 = vmul.f32 %v378, %v730
        %v743 = vmul.f32 %v369, %v730
        %v744 = vmul.f32 %v321, %v730
        %v745 = vmul.f32 %v379, %v730
        %v746 = vmul.f32 %v370, %v730
        %v747 = vmul.f32 %v324, %v730
        %v748 = vmul.f32 %v380, %v730
        %v749 = vmul.f32 %v371, %v730
        %v750 = vmul.f32 %v327, %v730
        %v751 = vmul.f32 %v381, %v730
        %v752 = vmul.f32 %v372, %v730
        %v753 = vmul.f32 %v330, %v730
        %v754 = vmul.f32 %v382, %v730
        %vm779 = vcmask 1046528
        %v780 = vrot.slane %v731, 1
        %v781 = vrot.slane %v732, 1
        %v782 = vsel %vm779, %v780, %v781
        %v783 = vrot.slane %v733, 1
        %v784 = vsel %vm779, %v781, %v783
        %v785 = vrot.slane %v734, 1
        %v786 = vrot.slane %v735, 1
        %v787 = vsel %vm779, %v785, %v786
        %v788 = vrot.slane %v736, 1
        %v789 = vsel %vm779, %v786, %v788
        %v790 = vrot.slane %v737, 1
        %v791 = vrot.slane %v738, 1
        %v792 = vsel %vm779, %v790, %v791
        %v793 = vrot.slane %v739, 1
        %v794 = vsel %vm779, %v791, %v793
        %v795 = vrot.slane %v740, 1
        %v796 = vrot.slane %v741, 1
        %v797 = vsel %vm779, %v795, %v796
        %v798 = vrot.slane %v742, 1
        %v799 = vsel %vm779, %v796, %v798
        %v800 = vrot.slane %v743, 1
        %v801 = vrot.slane %v744, 1
        %v802 = vsel %vm779, %v800, %v801
        %v803 = vrot.slane %v745, 1
        %v804 = vsel %vm779, %v801, %v803
        %v805 = vrot.slane %v746, 1
        %v806 = vrot.slane %v747, 1
        %v807 = vsel %vm779, %v805, %v806
        %v808 = vrot.slane %v748, 1
        %v809 = vsel %vm779, %v806, %v808
        %v810 = vrot.slane %v749, 1
        %v811 = vrot.slane %v750, 1
        %v812 = vsel %vm779, %v810, %v811
        %v813 = vrot.slane %v751, 1
        %v814 = vsel %vm779, %v811, %v813
        %v815 = vrot.slane %v752, 1
        %v816 = vrot.slane %v753, 1
        %v817 = vsel %vm779, %v815, %v816
        %v818 = vrot.slane %v754, 1
        %v819 = vsel %vm779, %v816, %v818
        %v836 = vadd.f32 %v603, %v782
        %v837 = vadd.f32 %v604, %v784
        %v838 = vadd.f32 %v605, %v787
        %v839 = vadd.f32 %v606, %v789
        %v840 = vadd.f32 %v607, %v792
        %v841 = vadd.f32 %v608, %v794
        %v842 = vadd.f32 %v609, %v797
        %v843 = vadd.f32 %v610, %v799
        %v844 = vadd.f32 %v611, %v802
        %v845 = vadd.f32 %v612, %v804
        %v846 = vadd.f32 %v613, %v807
        %v847 = vadd.f32 %v614, %v809
        %v848 = vadd.f32 %v615, %v812
        %v849 = vadd.f32 %v616, %v814
        %v850 = vadd.f32 %v617, %v817
        %v851 = vadd.f32 %v618, %v819
        %v852 = vlaneseq
        %v853 = vshrl.u32 %v852, 7
        %v854 = vsub.s32 5, %v853
        %v855 = vrot.slane %v280, %v854
        %v856 = vmul.f32 %v365, %v855
        %v857 = vmul.f32 %v309, %v855
        %v858 = vmul.f32 %v375, %v855
        %v859 = vmul.f32 %v366, %v855
        %v860 = vmul.f32 %v312, %v855
        %v861 = vmul.f32 %v376, %v855
        %v862 = vmul.f32 %v367, %v855
        %v863 = vmul.f32 %v315, %v855
        %v864 = vmul.f32 %v377, %v855
        %v865 = vmul.f32 %v368, %v855
        %v866 = vmul.f32 %v318, %v855
        %v867 = vmul.f32 %v378, %v855
        %v868 = vmul.f32 %v369, %v855
        %v869 = vmul.f32 %v321, %v855
        %v870 = vmul.f32 %v379, %v855
        %v871 = vmul.f32 %v370, %v855
        %v872 = vmul.f32 %v324, %v855
        %v873 = vmul.f32 %v380, %v855
        %v874 = vmul.f32 %v371, %v855
        %v875 = vmul.f32 %v327, %v855
        %v876 = vmul.f32 %v381, %v855
        %v877 = vmul.f32 %v372, %v855
        %v878 = vmul.f32 %v330, %v855
        %v879 = vmul.f32 %v382, %v855
        %v904 = vrot.slane %v856, 1
        %v905 = vrot.slane %v857, 1
        %v906 = vsel %vm779, %v904, %v905
        %v907 = vrot.slane %v858, 1
        %v908 = vsel %vm779, %v905, %v907
        %v909 = vrot.slane %v859, 1
        %v910 = vrot.slane %v860, 1
        %v911 = vsel %vm779, %v909, %v910
        %v912 = vrot.slane %v861, 1
        %v913 = vsel %vm779, %v910, %v912
        %v914 = vrot.slane %v862, 1
        %v915 = vrot.slane %v863, 1
        %v916 = vsel %vm779, %v914, %v915
        %v917 = vrot.slane %v864, 1
        %v918 = vsel %vm779, %v915, %v917
        %v919 = vrot.slane %v865, 1
        %v920 = vrot.slane %v866, 1
        %v921 = vsel %vm779, %v919, %v920
        %v922 = vrot.slane %v867, 1
        %v923 = vsel %vm779, %v920, %v922
        %v924 = vrot.slane %v868, 1
        %v925 = vrot.slane %v869, 1
        %v926 = vsel %vm779, %v924, %v925
        %v927 = vrot.slane %v870, 1
        %v928 = vsel %vm779, %v925, %v927
        %v929 = vrot.slane %v871, 1
        %v930 = vrot.slane %v872, 1
        %v931 = vsel %vm779, %v929, %v930
        %v932 = vrot.slane %v873, 1
        %v933 = vsel %vm779, %v930, %v932
        %v934 = vrot.slane %v874, 1
        %v935 = vrot.slane %v875, 1
        %v936 = vsel %vm779, %v934, %v935
        %v937 = vrot.slane %v876, 1
        %v938 = vsel %vm779, %v935, %v937
        %v939 = vrot.slane %v877, 1
        %v940 = vrot.slane %v878, 1
        %v941 = vsel %vm779, %v939, %v940
        %v942 = vrot.slane %v879, 1
        %v943 = vsel %vm779, %v940, %v942
        %v968 = vadd.f32 %v703, %v906
        %v969 = vadd.f32 %v704, %v908
        %v970 = vadd.f32 %v705, %v907
        %v971 = vadd.f32 %v706, %v911
        %v972 = vadd.f32 %v707, %v913
        %v973 = vadd.f32 %v708, %v912
        %v974 = vadd.f32 %v709, %v916
        %v975 = vadd.f32 %v710, %v918
        %v976 = vadd.f32 %v711, %v917
        %v977 = vadd.f32 %v712, %v921
        %v978 = vadd.f32 %v713, %v923
        %v979 = vadd.f32 %v714, %v922
        %v980 = vadd.f32 %v715, %v926
        %v981 = vadd.f32 %v716, %v928
        %v982 = vadd.f32 %v717, %v927
        %v983 = vadd.f32 %v718, %v931
        %v984 = vadd.f32 %v719, %v933
        %v985 = vadd.f32 %v720, %v932
        %v986 = vadd.f32 %v721, %v936
        %v987 = vadd.f32 %v722, %v938
        %v988 = vadd.f32 %v723, %v937
        %v989 = vadd.f32 %v724, %v941
        %v990 = vadd.f32 %v725, %v943
        %v991 = vadd.f32 %v726, %v942
        %v992 = vlaneseq
        %v993 = vshrl.u32 %v992, 7
        %v994 = vsub.s32 6, %v993
        %v995 = vrot.slane %v280, %v994
        %v996 = vmul.f32 %v366, %v995
        %v997 = vmul.f32 %v312, %v995
        %v998 = vmul.f32 %v367, %v995
        %v999 = vmul.f32 %v315, %v995
        %v1000 = vmul.f32 %v368, %v995
        %v1001 = vmul.f32 %v318, %v995
        %v1002 = vmul.f32 %v369, %v995
        %v1003 = vmul.f32 %v321, %v995
        %v1004 = vmul.f32 %v370, %v995
        %v1005 = vmul.f32 %v324, %v995
        %v1006 = vmul.f32 %v371, %v995
        %v1007 = vmul.f32 %v327, %v995
        %v1008 = vmul.f32 %v372, %v995
        %v1009 = vmul.f32 %v330, %v995
        %v1010 = vmul.f32 %v373, %v995
        %v1011 = vmul.f32 %v333, %v995
        %v1012 = vadd.f32 %v836, %v996
        %v1013 = vadd.f32 %v837, %v997
        %v1014 = vadd.f32 %v838, %v998
        %v1015 = vadd.f32 %v839, %v999
        %v1016 = vadd.f32 %v840, %v1000
        %v1017 = vadd.f32 %v841, %v1001
        %v1018 = vadd.f32 %v842, %v1002
        %v1019 = vadd.f32 %v843, %v1003
        %v1020 = vadd.f32 %v844, %v1004
        %v1021 = vadd.f32 %v845, %v1005
        %v1022 = vadd.f32 %v846, %v1006
        %v1023 = vadd.f32 %v847, %v1007
        %v1024 = vadd.f32 %v848, %v1008
        %v1025 = vadd.f32 %v849, %v1009
        %v1026 = vadd.f32 %v850, %v1010
        %v1027 = vadd.f32 %v851, %v1011
        %v1028 = vlaneseq
        %v1029 = vshrl.u32 %v1028, 7
        %v1030 = vsub.s32 7, %v1029
        %v1031 = vrot.slane %v280, %v1030
        %v1032 = vmul.f32 %v366, %v1031
        %v1033 = vmul.f32 %v312, %v1031
        %v1034 = vmul.f32 %v376, %v1031
        %v1035 = vmul.f32 %v367, %v1031
        %v1036 = vmul.f32 %v315, %v1031
        %v1037 = vmul.f32 %v377, %v1031
        %v1038 = vmul.f32 %v368, %v1031
        %v1039 = vmul.f32 %v318, %v1031
        %v1040 = vmul.f32 %v378, %v1031
        %v1041 = vmul.f32 %v369, %v1031
        %v1042 = vmul.f32 %v321, %v1031
        %v1043 = vmul.f32 %v379, %v1031
        %v1044 = vmul.f32 %v370, %v1031
        %v1045 = vmul.f32 %v324, %v1031
        %v1046 = vmul.f32 %v380, %v1031
        %v1047 = vmul.f32 %v371, %v1031
        %v1048 = vmul.f32 %v327, %v1031
        %v1049 = vmul.f32 %v381, %v1031
        %v1050 = vmul.f32 %v372, %v1031
        %v1051 = vmul.f32 %v330, %v1031
        %v1052 = vmul.f32 %v382, %v1031
        %v1053 = vmul.f32 %v373, %v1031
        %v1054 = vmul.f32 %v333, %v1031
        %v1055 = vmul.f32 %v383, %v1031
        %v1056 = vadd.f32 %v968, %v1032
        %v1057 = vadd.f32 %v969, %v1033
        %v1058 = vadd.f32 %v970, %v1034
        %v1059 = vadd.f32 %v971, %v1035
        %v1060 = vadd.f32 %v972, %v1036
        %v1061 = vadd.f32 %v973, %v1037
        %v1062 = vadd.f32 %v974, %v1038
        %v1063 = vadd.f32 %v975, %v1039
        %v1064 = vadd.f32 %v976, %v1040
        %v1065 = vadd.f32 %v977, %v1041
        %v1066 = vadd.f32 %v978, %v1042
        %v1067 = vadd.f32 %v979, %v1043
        %v1068 = vadd.f32 %v980, %v1044
        %v1069 = vadd.f32 %v981, %v1045
        %v1070 = vadd.f32 %v982, %v1046
        %v1071 = vadd.f32 %v983, %v1047
        %v1072 = vadd.f32 %v984, %v1048
        %v1073 = vadd.f32 %v985, %v1049
        %v1074 = vadd.f32 %v986, %v1050
        %v1075 = vadd.f32 %v987, %v1051
        %v1076 = vadd.f32 %v988, %v1052
        %v1077 = vadd.f32 %v989, %v1053
        %v1078 = vadd.f32 %v990, %v1054
        %v1079 = vadd.f32 %v991, %v1055
        %v1080 = vlaneseq
        %v1081 = vshrl.u32 %v1080, 7
        %v1082 = vsub.s32 0, %v1081
        %v1083 = vrot.slane %v281, %v1082
        %v1084 = vmul.f32 %v366, %v1083
        %v1085 = vmul.f32 %v312, %v1083
        %v1086 = vmul.f32 %v376, %v1083
        %v1087 = vmul.f32 %v367, %v1083
        %v1088 = vmul.f32 %v315, %v1083
        %v1089 = vmul.f32 %v377, %v1083
        %v1090 = vmul.f32 %v368, %v1083
        %v1091 = vmul.f32 %v318, %v1083
        %v1092 = vmul.f32 %v378, %v1083
        %v1093 = vmul.f32 %v369, %v1083
        %v1094 = vmul.f32 %v321, %v1083
        %v1095 = vmul.f32 %v379, %v1083
        %v1096 = vmul.f32 %v370, %v1083
        %v1097 = vmul.f32 %v324, %v1083
        %v1098 = vmul.f32 %v380, %v1083
        %v1099 = vmul.f32 %v371, %v1083
        %v1100 = vmul.f32 %v327, %v1083
        %v1101 = vmul.f32 %v381, %v1083
        %v1102 = vmul.f32 %v372, %v1083
        %v1103 = vmul.f32 %v330, %v1083
        %v1104 = vmul.f32 %v382, %v1083
        %v1105 = vmul.f32 %v373, %v1083
        %v1106 = vmul.f32 %v333, %v1083
        %v1107 = vmul.f32 %v383, %v1083
        %v1132 = vrot.slane %v1084, 2
        %v1133 = vrot.slane %v1085, 2
        %v1134 = vsel %vm546, %v1132, %v1133
        %v1135 = vrot.slane %v1086, 2
        %v1136 = vsel %vm546, %v1133, %v1135
        %v1137 = vrot.slane %v1087, 2
        %v1138 = vrot.slane %v1088, 2
        %v1139 = vsel %vm546, %v1137, %v1138
        %v1140 = vrot.slane %v1089, 2
        %v1141 = vsel %vm546, %v1138, %v1140
        %v1142 = vrot.slane %v1090, 2
        %v1143 = vrot.slane %v1091, 2
        %v1144 = vsel %vm546, %v1142, %v1143
        %v1145 = vrot.slane %v1092, 2
        %v1146 = vsel %vm546, %v1143, %v1145
        %v1147 = vrot.slane %v1093, 2
        %v1148 = vrot.slane %v1094, 2
        %v1149 = vsel %vm546, %v1147, %v1148
        %v1150 = vrot.slane %v1095, 2
        %v1151 = vsel %vm546, %v1148, %v1150
        %v1152 = vrot.slane %v1096, 2
        %v1153 = vrot.slane %v1097, 2
        %v1154 = vsel %vm546, %v1152, %v1153
        %v1155 = vrot.slane %v1098, 2
        %v1156 = vsel %vm546, %v1153, %v1155
        %v1157 = vrot.slane %v1099, 2
        %v1158 = vrot.slane %v1100, 2
        %v1159 = vsel %vm546, %v1157, %v1158
        %v1160 = vrot.slane %v1101, 2
        %v1161 = vsel %vm546, %v1158, %v1160
        %v1162 = vrot.slane %v1102, 2
        %v1163 = vrot.slane %v1103, 2
        %v1164 = vsel %vm546, %v1162, %v1163
        %v1165 = vrot.slane %v1104, 2
        %v1166 = vsel %vm546, %v1163, %v1165
        %v1167 = vrot.slane %v1105, 2
        %v1168 = vrot.slane %v1106, 2
        %v1169 = vsel %vm546, %v1167, %v1168
        %v1170 = vrot.slane %v1107, 2
        %v1171 = vsel %vm546, %v1168, %v1170
        %v1188 = vadd.f32 %v1012, %v1134
        %v1189 = vadd.f32 %v1013, %v1136
        %v1190 = vadd.f32 %v1014, %v1139
        %v1191 = vadd.f32 %v1015, %v1141
        %v1192 = vadd.f32 %v1016, %v1144
        %v1193 = vadd.f32 %v1017, %v1146
        %v1194 = vadd.f32 %v1018, %v1149
        %v1195 = vadd.f32 %v1019, %v1151
        %v1196 = vadd.f32 %v1020, %v1154
        %v1197 = vadd.f32 %v1021, %v1156
        %v1198 = vadd.f32 %v1022, %v1159
        %v1199 = vadd.f32 %v1023, %v1161
        %v1200 = vadd.f32 %v1024, %v1164
        %v1201 = vadd.f32 %v1025, %v1166
        %v1202 = vadd.f32 %v1026, %v1169
        %v1203 = vadd.f32 %v1027, %v1171
        %v1228 = vrot.slane %v1056, 1
        %v1229 = vrot.slane %v1057, 1
        %v1230 = vsel %vm779, %v1228, %v1229
        %v1231 = vrot.slane %v1058, 1
        %v1232 = vsel %vm779, %v1229, %v1231
        %v1233 = vrot.slane %v1059, 1
        %v1234 = vrot.slane %v1060, 1
        %v1235 = vsel %vm779, %v1233, %v1234
        %v1236 = vrot.slane %v1061, 1
        %v1237 = vsel %vm779, %v1234, %v1236
        %v1238 = vrot.slane %v1062, 1
        %v1239 = vrot.slane %v1063, 1
        %v1240 = vsel %vm779, %v1238, %v1239
        %v1241 = vrot.slane %v1064, 1
        %v1242 = vsel %vm779, %v1239, %v1241
        %v1243 = vrot.slane %v1065, 1
        %v1244 = vrot.slane %v1066, 1
        %v1245 = vsel %vm779, %v1243, %v1244
        %v1246 = vrot.slane %v1067, 1
        %v1247 = vsel %vm779, %v1244, %v1246
        %v1248 = vrot.slane %v1068, 1
        %v1249 = vrot.slane %v1069, 1
        %v1250 = vsel %vm779, %v1248, %v1249
        %v1251 = vrot.slane %v1070, 1
        %v1252 = vsel %vm779, %v1249, %v1251
        %v1253 = vrot.slane %v1071, 1
        %v1254 = vrot.slane %v1072, 1
        %v1255 = vsel %vm779, %v1253, %v1254
        %v1256 = vrot.slane %v1073, 1
        %v1257 = vsel %vm779, %v1254, %v1256
        %v1258 = vrot.slane %v1074, 1
        %v1259 = vrot.slane %v1075, 1
        %v1260 = vsel %vm779, %v1258, %v1259
        %v1261 = vrot.slane %v1076, 1
        %v1262 = vsel %vm779, %v1259, %v1261
        %v1263 = vrot.slane %v1077, 1
        %v1264 = vrot.slane %v1078, 1
        %v1265 = vsel %vm779, %v1263, %v1264
        %v1266 = vrot.slane %v1079, 1
        %v1267 = vsel %vm779, %v1264, %v1266
        %v1284 = vadd.f32 %v1188, %v1230
        %v1285 = vadd.f32 %v1189, %v1232
        %v1286 = vadd.f32 %v1190, %v1235
        %v1287 = vadd.f32 %v1191, %v1237
        %v1288 = vadd.f32 %v1192, %v1240
        %v1289 = vadd.f32 %v1193, %v1242
        %v1290 = vadd.f32 %v1194, %v1245
        %v1291 = vadd.f32 %v1195, %v1247
        %v1292 = vadd.f32 %v1196, %v1250
        %v1293 = vadd.f32 %v1197, %v1252
        %v1294 = vadd.f32 %v1198, %v1255
        %v1295 = vadd.f32 %v1199, %v1257
        %v1296 = vadd.f32 %v1200, %v1260
        %v1297 = vadd.f32 %v1201, %v1262
        %v1298 = vadd.f32 %v1202, %v1265
        %v1299 = vadd.f32 %v1203, %v1267
        %1300 = vst [vmem:[%s178] sm:$0xff] %v1284
        %1301 = vst [vmem:[%s178 + $0x8] sm:$0xff] %v1285
        %1302 = vst [vmem:[%s178 + $0x10] sm:$0xff] %v1286
        %1303 = vst [vmem:[%s178 + $0x18] sm:$0xff] %v1287
        %1304 = vst [vmem:[%s178 + $0x20] sm:$0xff] %v1288
        %1305 = vst [vmem:[%s178 + $0x28] sm:$0xff] %v1289
        %1306 = vst [vmem:[%s178 + $0x30] sm:$0xff] %v1290
        %1307 = vst [vmem:[%s178 + $0x38] sm:$0xff] %v1291
        %1308 = vst [vmem:[%s178 + $0x40] sm:$0xff] %v1292
        %1309 = vst [vmem:[%s178 + $0x48] sm:$0xff] %v1293
        %1310 = vst [vmem:[%s178 + $0x50] sm:$0xff] %v1294
        %1311 = vst [vmem:[%s178 + $0x58] sm:$0xff] %v1295
        %1312 = vst [vmem:[%s178 + $0x60] sm:$0xff] %v1296
        %1313 = vst [vmem:[%s178 + $0x68] sm:$0xff] %v1297
        %1314 = vst [vmem:[%s178 + $0x70] sm:$0xff] %v1298
        %1315 = vst [vmem:[%s178 + $0x78] sm:$0xff] %v1299
        %s1316 = sand.u32 %s101, 1
        %s1317 = scalar_lea.sflag [#allocation6], %s1316
        %s1318 = sand.u32 %s101, 1
        %s1319 = smul.addr %s1318, 128
        %s1320 = scalar_lea.vmem [#allocation7], %s1319
        // Predicated region
        $region49: #{tpu_custom_call.1} parent=27 // pred_check
          %p1321 = pneg %p111
        $region50: #{tpu_custom_call.1} parent=27 // pred_check_branch
          %1323 = sbr.rel (%p1321) target = $region52
        $region51: #{tpu_custom_call.1} parent=27 // pred_region
          %s1324 = smul.u32 8, %s25
          %s1326 = ssub.s32 2048, 2048
          %1327 = vsyncadd %s1317, %s1326
          %s1328 = smul.addr %s1324, 2
          %s1329 = sadd.s32 %s24, %s1328
          %s1330 = smul.addr %s23, 32
          %s1331 = sadd.s32 %s1329, %s1330
          %s1332 = smul.addr %s1331, 128
          %s1333 = scalar_lea.hbm %s3, %s1332
          %s1334 = sshll.u32 %s1320, 4
          %s1335 = int_to_ptr.vmem [resolvable:$true] %s1334
          %1340 = dma.vmem_to_hbm [thread:$0]  %s1335, 2048, %s1333, %s1317, 128, 128, 8
        $region52: #{tpu_custom_call.1} parent=27 // pred_fallthru
          _
      $region28: #{tpu_custom_call.1} parent=5 // pred_fallthru
        _
      %p1341 = scmp.le.s32.totalorder 2, %s13
      // Predicated region
      $region53: #{tpu_custom_call.1} parent=5 // pred_check
        %p1342 = pneg %p1341
      $region54: #{tpu_custom_call.1} parent=5 // pred_check_branch
        %1344 = sbr.rel (%p1342) target = $region56
      $region55: #{tpu_custom_call.1} parent=5 // pred_region
        %s1345 = ssub.s32 %s13, 2
        // Predicated region
        $region57: #{tpu_custom_call.1} parent=55 // pred_check
          %p1346 = pneg %p117
        $region58: #{tpu_custom_call.1} parent=55 // pred_check_branch
          %1348 = sbr.rel (%p1346) target = $region60
        $region59: #{tpu_custom_call.1} parent=55 // pred_region
          %s1349 = sand.u32 %s102, 1
          %s1350 = scalar_lea.sflag [#allocation6], %s1349
          %s1351 = sand.u32 %s102, 1
          %s1352 = smul.addr %s1351, 128
          %s1353 = scalar_lea.vmem [#allocation7], %s1352
          %1354 = dma.done %s1350, 2048
        $region60: #{tpu_custom_call.1} parent=55 // pred_fallthru
          _
      $region56: #{tpu_custom_call.1} parent=5 // pred_fallthru
        _
    $region6: #{tpu_custom_call.1} parent=1 // loop_footer
      %s17 = sadd.s32 1, %s13
    $region7: #{tpu_custom_call.1} parent=1 // loop_footer_branch
      %12 = sbr.rel target = $region3
    $region8: #{tpu_custom_call.1} parent=1 // loop_exit
      _
    %1355 = vsyncpa [#allocation5], 1
    %s1356 = scalar_lea.sflag [#allocation5], 1
    %1357 = vsyncpa %s1356, 1
    %1358 = vsyncpa [#allocation6], 1
    %s1359 = scalar_lea.sflag [#allocation6], 1
    %1360 = vsyncpa %s1359, 1
  %1361 = vsyncmov [#allocation3]
  %s1362 = vpop.sfrf %1361
  %p1363 = scmp.eq.s32.totalorder %s1362, 0
  %p1364 = pneg %p1363
  %1366 = shalt.err (%p1364)
  %s1367 = scalar_lea.sflag [#allocation3], 1
  %1368 = vsyncmov %s1367
  %s1369 = vpop.sfrf %1368
  %p1370 = scmp.eq.s32.totalorder %s1369, 0
  %p1371 = pneg %p1370
  %1373 = shalt.err (%p1371)

</llo_original>
